<compile_context>
chip_gen: v5e
topology: v5e:2x2
jax: 0.10.0
libtpu: 0.0.40
codegen_flags: <defaults>
</compile_context>

<pallas_src>
import functools

import jax
import jax.numpy as jnp
from jax.experimental import pallas as pl
from jax.experimental.pallas import tpu as pltpu

LANE = 128  # internal lane-dense padding for all feature dims


# ----------------------------------------------------------------------------
# Fused encoder kernel: conv(matmul)+ReLU -> GAP -> fc1+ReLU -> fc2
# One grid step == one image; all intermediates stay in VMEM / vregs.
# ----------------------------------------------------------------------------
def _encoder_kernel(patches_ref, cw_ref, cb_ref, w1_ref, b1_ref, w2_ref, b2_ref,
                    y_ref, z_ref, *, inv_hw):
    p = patches_ref[0]                                            # (HW, KP_PAD)
    feat = jnp.dot(p, cw_ref[...], preferred_element_type=jnp.float32)
    feat = jnp.maximum(feat + cb_ref[...], 0.0)                   # conv + ReLU
    y = jnp.sum(feat, axis=0, keepdims=True) * inv_hw             # GAP (1, F_PAD)
    h = jnp.dot(y, w1_ref[...], preferred_element_type=jnp.float32) + b1_ref[...]
    h = jnp.maximum(h, 0.0)                                       # fc1 + ReLU
    z = jnp.dot(h, w2_ref[...], preferred_element_type=jnp.float32) + b2_ref[...]
    y_ref[0] = y
    z_ref[0] = z


def _im2col_3x3_padded(x_nchw, kp_pad):
    """NCHW -> (N, H*W, kp_pad) im2col patches, zero-padded to kp_pad lanes."""
    # TODO(synk): at realistic image sizes, avoid materializing im2col in HBM
    # (use in-kernel shifted-slice accumulation or lax.conv for the backbone).
    n, c, h, w = x_nchw.shape
    x = jnp.transpose(x_nchw, (0, 2, 3, 1))                       # NHWC
    xp = jnp.pad(x, ((0, 0), (1, 1), (1, 1), (0, 0)))
    cols = [xp[:, dy:dy + h, dx:dx + w, :] for dy in range(3) for dx in range(3)]
    patches = jnp.concatenate(cols, axis=-1).reshape(n, h * w, 9 * c)
    return jnp.pad(patches, ((0, 0), (0, 0), (0, kp_pad - 9 * c)))


def encoder_forward(params, x_nchw):
    """Returns (y, z): pooled backbone features and projection (both lane-padded)."""
    n, _, h, w = x_nchw.shape
    hw = h * w
    kp_pad, f_pad = params["conv_w"].shape
    p_pad = params["fc2_w"].shape[1]
    patches = _im2col_3x3_padded(x_nchw, kp_pad)                  # (N, HW, KP_PAD)

    y3, z3 = pl.pallas_call(
        functools.partial(_encoder_kernel, inv_hw=1.0 / float(hw)),
        out_shape=(
            jax.ShapeDtypeStruct((n, 1, f_pad), jnp.float32),
            jax.ShapeDtypeStruct((n, 1, p_pad), jnp.float32),
        ),
        grid=(n,),
        in_specs=[
            pl.BlockSpec((1, hw, kp_pad), lambda i: (i, 0, 0)),
            pl.BlockSpec((kp_pad, f_pad), lambda i: (0, 0)),
            pl.BlockSpec((1, f_pad), lambda i: (0, 0)),
            pl.BlockSpec((f_pad, f_pad), lambda i: (0, 0)),
            pl.BlockSpec((1, f_pad), lambda i: (0, 0)),
            pl.BlockSpec((f_pad, p_pad), lambda i: (0, 0)),
            pl.BlockSpec((1, p_pad), lambda i: (0, 0)),
        ],
        out_specs=(
            pl.BlockSpec((1, 1, f_pad), lambda i: (i, 0, 0)),
            pl.BlockSpec((1, 1, p_pad), lambda i: (i, 0, 0)),
        ),
        compiler_params=pltpu.CompilerParams(dimension_semantics=("parallel",)),
    )(patches, params["conv_w"], params["conv_b"],
      params["fc1_w"], params["fc1_b"], params["fc2_w"], params["fc2_b"])
    return y3.reshape(n, f_pad), z3.reshape(n, p_pad)


# ----------------------------------------------------------------------------
# Fused MoCo contrastive kernel: normalize, l_pos, l_neg, /T, logits slab,
# in-kernel queue enqueue (aliased queue buffer, ptr from SMEM).
# queue layout: (K, proj_pad) -- each row is one normalized key.
# ----------------------------------------------------------------------------
def _moco_kernel(queue_ref, q_ref, k_ref, ptr_ref, logits_ref, queue_out_ref,
                 *, inv_t, n_keys, ptr_mult):
    q = q_ref[...]
    k = k_ref[...]
    # F.normalize(x, dim=1): x / max(||x||_2, 1e-12); padded lanes are zero.
    qn = q / jnp.maximum(jnp.sqrt(jnp.sum(q * q, axis=1, keepdims=True)), 1e-12)
    kn = k / jnp.maximum(jnp.sqrt(jnp.sum(k * k, axis=1, keepdims=True)), 1e-12)

    queue = queue_ref[...]                                        # (K, C_PAD)
    l_pos = jnp.sum(qn * kn, axis=1, keepdims=True)               # (N, 1)
    l_neg = jnp.dot(qn, queue.T, preferred_element_type=jnp.float32)  # (N, K)
    logits_ref[...] = jnp.concatenate([l_pos, l_neg], axis=1) * inv_t

    # _dequeue_and_enqueue: ring-buffer write of the normalized keys.
    queue_out_ref[...] = queue
    ptr = pl.multiple_of(ptr_ref[0], ptr_mult)
    queue_out_ref[pl.ds(ptr, n_keys), :] = kn


def moco_logits_enqueue(q, k, queue_t, queue_ptr, temperature):
    """Returns (logits=(N,1+K) already /T, updated queue (K, C_PAD))."""
    n, c_pad = q.shape
    k_dict, c_pad2 = queue_t.shape
    assert c_pad == c_pad2 and k.shape == (n, c_pad)
    ptr_mult = 8 if (n % 8 == 0 and k_dict % 8 == 0) else 1
    logits, queue_new = pl.pallas_call(
        functools.partial(_moco_kernel, inv_t=float(1.0 / temperature),
                          n_keys=n, ptr_mult=ptr_mult),
        out_shape=(
            jax.ShapeDtypeStruct((n, 1 + k_dict), jnp.float32),
            jax.ShapeDtypeStruct((k_dict, c_pad), jnp.float32),
        ),
        grid=(1,),
        in_specs=[
            pl.BlockSpec((k_dict, c_pad), lambda i: (0, 0)),
            pl.BlockSpec((n, c_pad), lambda i: (0, 0)),
            pl.BlockSpec((n, c_pad), lambda i: (0, 0)),
            pl.BlockSpec(memory_space=pltpu.MemorySpace.SMEM),
        ],
        out_specs=(
            pl.BlockSpec((n, 1 + k_dict), lambda i: (0, 0)),
            pl.BlockSpec((k_dict, c_pad), lambda i: (0, 0)),
        ),
        input_output_aliases={0: 1},   # queue in -> queue out (in-place enqueue)
    )(queue_t, q, k, queue_ptr)
    return logits, queue_new


# ----------------------------------------------------------------------------
# Synthetic SelfSupervisedModel params (lane-padded; padded regions stay zero)
# ----------------------------------------------------------------------------
def init_encoder_params(key, c_in, feat_ch, proj_dim, kp_pad, f_pad, p_pad):
    k1, k2, k3 = jax.random.split(key, 3)
    kp = 9 * c_in
    conv_w = jnp.zeros((kp_pad, f_pad), jnp.float32).at[:kp, :feat_ch].set(
        jax.random.normal(k1, (kp, feat_ch), jnp.float32) * (kp ** -0.5))
    fc1_w = jnp.zeros((f_pad, f_pad), jnp.float32).at[:feat_ch, :feat_ch].set(
        jax.random.normal(k2, (feat_ch, feat_ch), jnp.float32) * (feat_ch ** -0.5))
    fc2_w = jnp.zeros((f_pad, p_pad), jnp.float32).at[:feat_ch, :proj_dim].set(
        jax.random.normal(k3, (feat_ch, proj_dim), jnp.float32) * (feat_ch ** -0.5))
    return {
        "conv_w": conv_w, "conv_b": jnp.zeros((1, f_pad), jnp.float32),
        "fc1_w": fc1_w, "fc1_b": jnp.zeros((1, f_pad), jnp.float32),
        "fc2_w": fc2_w, "fc2_b": jnp.zeros((1, p_pad), jnp.float32),
    }


# ----------------------------------------------------------------------------
# MoCoTrainer.forward (single device, world_size == 1)
# ----------------------------------------------------------------------------
def moco_forward(params_q, params_k, queue_t, queue_ptr, im_q, im_k,
                 *, m, T, feat_dim):
    # query encoder
    y_q, q = encoder_forward(params_q, im_q)

    # ----- torch.no_grad() block -----
    # momentum update of the key encoder (padded regions stay zero)
    params_k = jax.tree_util.tree_map(
        lambda pk, pq: pk * m + pq * (1.0 - m), params_k, params_q)
    # TODO(synk): _batch_shuffle_ddp / _batch_unshuffle_ddp are identity at world_size==1.
    y_k, k = encoder_forward(params_k, im_k)

    # contrastive hot path + in-kernel enqueue
    n = q.shape[0]
    big_k = queue_t.shape[0]
    assert big_k % n == 0  # PyTorch ring-buffer invariant: ptr never wraps mid-write
    logits, queue_t = moco_logits_enqueue(q, k, queue_t, queue_ptr, T)
    labels = jnp.zeros((n,), jnp.int32)
    queue_ptr = (queue_ptr + n) % big_k

    return (logits, labels, y_q[:, :feat_dim], y_k[:, :feat_dim],
            queue_t, queue_ptr, params_k)


# ----------------------------------------------------------------------------
if __name__ == "__main__":
    # config['SSL'] analogues
    MOMENTUM = 0.999
    DICT_SIZE = 128
    TEMPERATURE = 0.07
    PROJ_DIM = 32
    FEAT_CH = 32

    N, C_IN, H, W = 8, 4, 16, 16
    KP_PAD, F_PAD, P_PAD = LANE, LANE, LANE

    root = jax.random.PRNGKey(0)
    k_imq, k_imk, k_queue, k_params = jax.random.split(root, 4)

    im_q = jax.random.normal(k_imq, (N, C_IN, H, W), jnp.float32)
    im_k = jax.random.normal(k_imk, (N, C_IN, H, W), jnp.float32)

    params_q = init_encoder_params(k_params, C_IN, FEAT_CH, PROJ_DIM,
                                   KP_PAD, F_PAD, P_PAD)
    # param_k.data.copy_(param_q.data)
    params_k = jax.tree_util.tree_map(lambda p: p, params_q)

    # queue = F.normalize(randn(proj_dim, K), dim=0); stored internally as
    # (K, P_PAD) rows so the in-kernel enqueue is a sublane-sliced store.
    queue = jax.random.normal(k_queue, (PROJ_DIM, DICT_SIZE), jnp.float32)
    queue = queue / jnp.maximum(
        jnp.sqrt(jnp.sum(queue * queue, axis=0, keepdims=True)), 1e-12)
    queue_t = jnp.zeros((DICT_SIZE, P_PAD), jnp.float32).at[:, :PROJ_DIM].set(queue.T)
    queue_ptr = jnp.zeros((1,), jnp.int32)

    fwd = jax.jit(functools.partial(
        moco_forward, m=MOMENTUM, T=TEMPERATURE, feat_dim=FEAT_CH))

    logits, labels, y_q, y_k, queue_t, queue_ptr, params_k = fwd(
        params_q, params_k, queue_t, queue_ptr, im_q, im_k)

    jax.block_until_ready((logits, labels, y_q, y_k, queue_t, queue_ptr))
    assert logits.shape == (N, 1 + DICT_SIZE)
    assert labels.shape == (N,)
    assert y_q.shape == (N, FEAT_CH) and y_k.shape == (N, FEAT_CH)
    assert queue_t.shape == (DICT_SIZE, P_PAD)
    assert int(queue_ptr[0]) == N % DICT_SIZE
    print("KERNEL_OK")
</pallas_src>

<mosaic_0001>
module attributes {stable_mosaic.version = 11 : i64} {
  func.func @_encoder_kernel(%arg0: i32, %arg1: memref<1x256x128xf32, #tpu.memory_space<vmem>>, %arg2: memref<128x128xf32, #tpu.memory_space<vmem>>, %arg3: memref<1x128xf32, #tpu.memory_space<vmem>>, %arg4: memref<128x128xf32, #tpu.memory_space<vmem>>, %arg5: memref<1x128xf32, #tpu.memory_space<vmem>>, %arg6: memref<128x128xf32, #tpu.memory_space<vmem>>, %arg7: memref<1x128xf32, #tpu.memory_space<vmem>>, %arg8: memref<1x1x128xf32, #tpu.memory_space<vmem>>, %arg9: memref<1x1x128xf32, #tpu.memory_space<vmem>>) attributes {dimension_semantics = [#tpu.dimension_semantics<parallel>], iteration_bounds = array<i64: 8>, scalar_prefetch = 0 : i64, scratch_operands = 0 : i64, tpu.core_type = #tpu.core_type<tc>, window_params = [{transform_indices = @transform_0, window_bounds = array<i64: 1, 256, 128>}, {pipeline_mode = #tpu.pipeline_mode<synchronous>, transform_indices = @transform_1, window_bounds = array<i64: 128, 128>}, {pipeline_mode = #tpu.pipeline_mode<synchronous>, transform_indices = @transform_2, window_bounds = array<i64: 1, 128>}, {pipeline_mode = #tpu.pipeline_mode<synchronous>, transform_indices = @transform_3, window_bounds = array<i64: 128, 128>}, {pipeline_mode = #tpu.pipeline_mode<synchronous>, transform_indices = @transform_4, window_bounds = array<i64: 1, 128>}, {pipeline_mode = #tpu.pipeline_mode<synchronous>, transform_indices = @transform_5, window_bounds = array<i64: 128, 128>}, {pipeline_mode = #tpu.pipeline_mode<synchronous>, transform_indices = @transform_6, window_bounds = array<i64: 1, 128>}, {transform_indices = @transform_7, window_bounds = array<i64: 1, 1, 128>}, {transform_indices = @transform_8, window_bounds = array<i64: 1, 1, 128>}]} {
    %c0 = arith.constant 0 : index
    %c0_0 = arith.constant 0 : index
    %c0_1 = arith.constant 0 : index
    %0 = vector.load %arg1[%c0, %c0_0, %c0_1] : memref<1x256x128xf32, #tpu.memory_space<vmem>>, vector<1x256x128xf32>
    %1 = vector.shape_cast %0 : vector<1x256x128xf32> to vector<256x128xf32>
    %c0_2 = arith.constant 0 : index
    %c0_3 = arith.constant 0 : index
    %2 = vector.load %arg2[%c0_2, %c0_3] : memref<128x128xf32, #tpu.memory_space<vmem>>, vector<128x128xf32>
    %cst = arith.constant dense<0.000000e+00> : vector<256x128xf32>
    %3 = tpu.matmul %1, %2, %cst {dimension_numbers = #tpu.dot_dimension_numbers<[1], [0], [0], [1], [0, 0, 1, 1], [], []>} : vector<256x128xf32>, vector<128x128xf32>, vector<256x128xf32> -> vector<256x128xf32>
    %c0_4 = arith.constant 0 : index
    %c0_5 = arith.constant 0 : index
    %4 = vector.load %arg3[%c0_4, %c0_5] : memref<1x128xf32, #tpu.memory_space<vmem>>, vector<1x128xf32>
    %5 = vector.broadcast %4 : vector<1x128xf32> to vector<256x128xf32>
    %6 = arith.addf %3, %5 : vector<256x128xf32>
    %cst_6 = arith.constant 0.000000e+00 : f32
    %7 = vector.broadcast %cst_6 : f32 to vector<256x128xf32>
    %8 = arith.maximumf %6, %7 : vector<256x128xf32>
    %cst_7 = arith.constant dense<0.000000e+00> : vector<128xf32>
    %9 = vector.multi_reduction <add>, %8, %cst_7 [0] : vector<256x128xf32> to vector<128xf32>
    %10 = vector.shape_cast %9 : vector<128xf32> to vector<1x128xf32>
    %cst_8 = arith.constant 3.906250e-03 : f32
    %11 = vector.broadcast %cst_8 : f32 to vector<1x128xf32>
    %12 = arith.mulf %10, %11 : vector<1x128xf32>
    %c0_9 = arith.constant 0 : index
    %c0_10 = arith.constant 0 : index
    %13 = vector.load %arg4[%c0_9, %c0_10] : memref<128x128xf32, #tpu.memory_space<vmem>>, vector<128x128xf32>
    %cst_11 = arith.constant dense<0.000000e+00> : vector<1x128xf32>
    %14 = tpu.matmul %12, %13, %cst_11 {dimension_numbers = #tpu.dot_dimension_numbers<[1], [0], [0], [1], [0, 0, 1, 1], [], []>} : vector<1x128xf32>, vector<128x128xf32>, vector<1x128xf32> -> vector<1x128xf32>
    %c0_12 = arith.constant 0 : index
    %c0_13 = arith.constant 0 : index
    %15 = vector.load %arg5[%c0_12, %c0_13] : memref<1x128xf32, #tpu.memory_space<vmem>>, vector<1x128xf32>
    %16 = arith.addf %14, %15 : vector<1x128xf32>
    %cst_14 = arith.constant 0.000000e+00 : f32
    %17 = vector.broadcast %cst_14 : f32 to vector<1x128xf32>
    %18 = arith.maximumf %16, %17 : vector<1x128xf32>
    %c0_15 = arith.constant 0 : index
    %c0_16 = arith.constant 0 : index
    %19 = vector.load %arg6[%c0_15, %c0_16] : memref<128x128xf32, #tpu.memory_space<vmem>>, vector<128x128xf32>
    %cst_17 = arith.constant dense<0.000000e+00> : vector<1x128xf32>
    %20 = tpu.matmul %18, %19, %cst_17 {dimension_numbers = #tpu.dot_dimension_numbers<[1], [0], [0], [1], [0, 0, 1, 1], [], []>} : vector<1x128xf32>, vector<128x128xf32>, vector<1x128xf32> -> vector<1x128xf32>
    %c0_18 = arith.constant 0 : index
    %c0_19 = arith.constant 0 : index
    %21 = vector.load %arg7[%c0_18, %c0_19] : memref<1x128xf32, #tpu.memory_space<vmem>>, vector<1x128xf32>
    %22 = arith.addf %20, %21 : vector<1x128xf32>
    %c0_20 = arith.constant 0 : index
    %c0_21 = arith.constant 0 : index
    %c0_22 = arith.constant 0 : index
    %23 = vector.load %arg8[%c0_20, %c0_21, %c0_22] : memref<1x1x128xf32, #tpu.memory_space<vmem>>, vector<1x1x128xf32>
    %24 = vector.shape_cast %23 : vector<1x1x128xf32> to vector<1x128xf32>
    %25 = vector.shape_cast %12 : vector<1x128xf32> to vector<1x1x128xf32>
    tpu.vector_store %arg8[%c0_20, %c0_21, %c0_22], %25 {strides = array<i32>} : memref<1x1x128xf32, #tpu.memory_space<vmem>>, vector<1x1x128xf32>,
    %c0_23 = arith.constant 0 : index
    %c0_24 = arith.constant 0 : index
    %c0_25 = arith.constant 0 : index
    %26 = vector.load %arg9[%c0_23, %c0_24, %c0_25] : memref<1x1x128xf32, #tpu.memory_space<vmem>>, vector<1x1x128xf32>
    %27 = vector.shape_cast %26 : vector<1x1x128xf32> to vector<1x128xf32>
    %28 = vector.shape_cast %22 : vector<1x128xf32> to vector<1x1x128xf32>
    tpu.vector_store %arg9[%c0_23, %c0_24, %c0_25], %28 {strides = array<i32>} : memref<1x1x128xf32, #tpu.memory_space<vmem>>, vector<1x1x128xf32>,
    return
  }
  func.func @transform_0(%arg0: i32) -> (i32, i32, i32) {
    %c0_i32 = arith.constant 0 : i32
    %c0_i32_0 = arith.constant 0 : i32
    %c0_i32_1 = arith.constant 0 : i32
    return %arg0, %c0_i32, %c0_i32_0 : i32, i32, i32
  }
  func.func @transform_1(%arg0: i32) -> (i32, i32) {
    %c0_i32 = arith.constant 0 : i32
    %c0_i32_0 = arith.constant 0 : i32
    %c0_i32_1 = arith.constant 0 : i32
    return %c0_i32, %c0_i32_0 : i32, i32
  }
  func.func @transform_2(%arg0: i32) -> (i32, i32) {
    %c0_i32 = arith.constant 0 : i32
    %c0_i32_0 = arith.constant 0 : i32
    %c0_i32_1 = arith.constant 0 : i32
    return %c0_i32, %c0_i32_0 : i32, i32
  }
  func.func @transform_3(%arg0: i32) -> (i32, i32) {
    %c0_i32 = arith.constant 0 : i32
    %c0_i32_0 = arith.constant 0 : i32
    %c0_i32_1 = arith.constant 0 : i32
    return %c0_i32, %c0_i32_0 : i32, i32
  }
  func.func @transform_4(%arg0: i32) -> (i32, i32) {
    %c0_i32 = arith.constant 0 : i32
    %c0_i32_0 = arith.constant 0 : i32
    %c0_i32_1 = arith.constant 0 : i32
    return %c0_i32, %c0_i32_0 : i32, i32
  }
  func.func @transform_5(%arg0: i32) -> (i32, i32) {
    %c0_i32 = arith.constant 0 : i32
    %c0_i32_0 = arith.constant 0 : i32
    %c0_i32_1 = arith.constant 0 : i32
    return %c0_i32, %c0_i32_0 : i32, i32
  }
  func.func @transform_6(%arg0: i32) -> (i32, i32) {
    %c0_i32 = arith.constant 0 : i32
    %c0_i32_0 = arith.constant 0 : i32
    %c0_i32_1 = arith.constant 0 : i32
    return %c0_i32, %c0_i32_0 : i32, i32
  }
  func.func @transform_7(%arg0: i32) -> (i32, i32, i32) {
    %c0_i32 = arith.constant 0 : i32
    %c0_i32_0 = arith.constant 0 : i32
    %c0_i32_1 = arith.constant 0 : i32
    return %arg0, %c0_i32, %c0_i32_0 : i32, i32, i32
  }
  func.func @transform_8(%arg0: i32) -> (i32, i32, i32) {
    %c0_i32 = arith.constant 0 : i32
    %c0_i32_0 = arith.constant 0 : i32
    %c0_i32_1 = arith.constant 0 : i32
    return %arg0, %c0_i32, %c0_i32_0 : i32, i32, i32
  }
}

module attributes {stable_mosaic.version = 11 : i64} {
  func.func @_moco_kernel(%arg0: i32, %arg1: memref<128x128xf32, #tpu.memory_space<vmem>>, %arg2: memref<8x128xf32, #tpu.memory_space<vmem>>, %arg3: memref<8x128xf32, #tpu.memory_space<vmem>>, %arg4: memref<1xi32, #tpu.memory_space<smem>>, %arg5: memref<8x129xf32, #tpu.memory_space<vmem>>, %arg6: memref<128x128xf32, #tpu.memory_space<vmem>>) attributes {dimension_semantics = [#tpu.dimension_semantics<arbitrary>], iteration_bounds = array<i64: 1>, scalar_prefetch = 0 : i64, scratch_operands = 0 : i64, tpu.core_type = #tpu.core_type<tc>, window_params = [{pipeline_mode = #tpu.pipeline_mode<synchronous>, transform_indices = @transform_0, window_bounds = array<i64: 128, 128>}, {pipeline_mode = #tpu.pipeline_mode<synchronous>, transform_indices = @transform_1, window_bounds = array<i64: 8, 128>}, {pipeline_mode = #tpu.pipeline_mode<synchronous>, transform_indices = @transform_2, window_bounds = array<i64: 8, 128>}, {transform_indices = @transform_3, window_bounds = array<i64: 1>}, {pipeline_mode = #tpu.pipeline_mode<synchronous>, transform_indices = @transform_4, window_bounds = array<i64: 8, 129>}, {pipeline_mode = #tpu.pipeline_mode<synchronous>, transform_indices = @transform_5, window_bounds = array<i64: 128, 128>}]} {
    %c0 = arith.constant 0 : index
    %c0_0 = arith.constant 0 : index
    %0 = vector.load %arg2[%c0, %c0_0] : memref<8x128xf32, #tpu.memory_space<vmem>>, vector<8x128xf32>
    %c0_1 = arith.constant 0 : index
    %c0_2 = arith.constant 0 : index
    %1 = vector.load %arg3[%c0_1, %c0_2] : memref<8x128xf32, #tpu.memory_space<vmem>>, vector<8x128xf32>
    %2 = arith.mulf %0, %0 : vector<8x128xf32>
    %cst = arith.constant dense<0.000000e+00> : vector<8xf32>
    %3 = vector.multi_reduction <add>, %2, %cst [1] : vector<8x128xf32> to vector<8xf32>
    %4 = vector.shape_cast %3 : vector<8xf32> to vector<8x1xf32>
    %5 = math.sqrt %4 : vector<8x1xf32>
    %cst_3 = arith.constant 9.99999996E-13 : f32
    %6 = vector.broadcast %cst_3 : f32 to vector<8x1xf32>
    %7 = arith.maximumf %5, %6 : vector<8x1xf32>
    %8 = vector.broadcast %7 : vector<8x1xf32> to vector<8x128xf32>
    %9 = arith.divf %0, %8 : vector<8x128xf32>
    %10 = arith.mulf %1, %1 : vector<8x128xf32>
    %cst_4 = arith.constant dense<0.000000e+00> : vector<8xf32>
    %11 = vector.multi_reduction <add>, %10, %cst_4 [1] : vector<8x128xf32> to vector<8xf32>
    %12 = vector.shape_cast %11 : vector<8xf32> to vector<8x1xf32>
    %13 = math.sqrt %12 : vector<8x1xf32>
    %cst_5 = arith.constant 9.99999996E-13 : f32
    %14 = vector.broadcast %cst_5 : f32 to vector<8x1xf32>
    %15 = arith.maximumf %13, %14 : vector<8x1xf32>
    %16 = vector.broadcast %15 : vector<8x1xf32> to vector<8x128xf32>
    %17 = arith.divf %1, %16 : vector<8x128xf32>
    %c0_6 = arith.constant 0 : index
    %c0_7 = arith.constant 0 : index
    %18 = vector.load %arg1[%c0_6, %c0_7] : memref<128x128xf32, #tpu.memory_space<vmem>>, vector<128x128xf32>
    %19 = arith.mulf %9, %17 : vector<8x128xf32>
    %cst_8 = arith.constant dense<0.000000e+00> : vector<8xf32>
    %20 = vector.multi_reduction <add>, %19, %cst_8 [1] : vector<8x128xf32> to vector<8xf32>
    %21 = vector.shape_cast %20 : vector<8xf32> to vector<8x1xf32>
    %22 = tpu.transpose %18, [1, 0] : vector<128x128xf32> -> vector<128x128xf32>
    %cst_9 = arith.constant dense<0.000000e+00> : vector<8x128xf32>
    %23 = tpu.matmul %9, %22, %cst_9 {dimension_numbers = #tpu.dot_dimension_numbers<[1], [0], [0], [1], [0, 0, 1, 1], [], []>} : vector<8x128xf32>, vector<128x128xf32>, vector<8x128xf32> -> vector<8x128xf32>
    %24 = tpu.concatenate %21, %23 in 1 : vector<8x1xf32>, vector<8x128xf32> -> vector<8x129xf32>
    %cst_10 = arith.constant 14.2857141 : f32
    %25 = vector.broadcast %cst_10 : f32 to vector<8x129xf32>
    %26 = arith.mulf %24, %25 : vector<8x129xf32>
    %c0_11 = arith.constant 0 : index
    %c0_12 = arith.constant 0 : index
    %27 = vector.load %arg5[%c0_11, %c0_12] : memref<8x129xf32, #tpu.memory_space<vmem>>, vector<8x129xf32>
    tpu.vector_store %arg5[%c0_11, %c0_12], %26 {strides = array<i32>} : memref<8x129xf32, #tpu.memory_space<vmem>>, vector<8x129xf32>,
    %c0_13 = arith.constant 0 : index
    %c0_14 = arith.constant 0 : index
    %28 = vector.load %arg6[%c0_13, %c0_14] : memref<128x128xf32, #tpu.memory_space<vmem>>, vector<128x128xf32>
    tpu.vector_store %arg6[%c0_13, %c0_14], %18 {strides = array<i32>} : memref<128x128xf32, #tpu.memory_space<vmem>>, vector<128x128xf32>,
    %c0_15 = arith.constant 0 : index
    %29 = memref.load %arg4[%c0_15] : memref<1xi32, #tpu.memory_space<smem>>
    %30 = tpu.assume_multiple %29, 8 : i32
    %31 = arith.index_cast %30 : i32 to index
    %c0_16 = arith.constant 0 : index
    %32 = vector.load %arg6[%31, %c0_16] : memref<128x128xf32, #tpu.memory_space<vmem>>, vector<8x128xf32>
    tpu.vector_store %arg6[%31, %c0_16], %17 {strides = array<i32>} : memref<128x128xf32, #tpu.memory_space<vmem>>, vector<8x128xf32>,
    return
  }
  func.func @transform_0(%arg0: i32) -> (i32, i32) {
    %c0_i32 = arith.constant 0 : i32
    %c0_i32_0 = arith.constant 0 : i32
    %c0_i32_1 = arith.constant 0 : i32
    return %c0_i32, %c0_i32_0 : i32, i32
  }
  func.func @transform_1(%arg0: i32) -> (i32, i32) {
    %c0_i32 = arith.constant 0 : i32
    %c0_i32_0 = arith.constant 0 : i32
    %c0_i32_1 = arith.constant 0 : i32
    return %c0_i32, %c0_i32_0 : i32, i32
  }
  func.func @transform_2(%arg0: i32) -> (i32, i32) {
    %c0_i32 = arith.constant 0 : i32
    %c0_i32_0 = arith.constant 0 : i32
    %c0_i32_1 = arith.constant 0 : i32
    return %c0_i32, %c0_i32_0 : i32, i32
  }
  func.func @transform_3(%arg0: i32) -> i32 {
    %c0_i32 = arith.constant 0 : i32
    %c0_i32_0 = arith.constant 0 : i32
    return %c0_i32 : i32
  }
  func.func @transform_4(%arg0: i32) -> (i32, i32) {
    %c0_i32 = arith.constant 0 : i32
    %c0_i32_0 = arith.constant 0 : i32
    %c0_i32_1 = arith.constant 0 : i32
    return %c0_i32, %c0_i32_0 : i32, i32
  }
  func.func @transform_5(%arg0: i32) -> (i32, i32) {
    %c0_i32 = arith.constant 0 : i32
    %c0_i32_0 = arith.constant 0 : i32
    %c0_i32_1 = arith.constant 0 : i32
    return %c0_i32, %c0_i32_0 : i32, i32
  }
}

</mosaic_0001>

<llo_original>
// kernel: moco_forward.3
$region0: #{moco_forward.3}
  #allocation0 [shape = 'u32[]', space=smem, size = 0x4, offset = 0x4, fixed_abs, tag = 'smem constant byte address 0x4 - core index']
  #allocation1 [shape = 'u32[72,128]{1,0:T(1,128)}', space=vmem, size = 0x9000, scoped, tag = 'internal scratch']
  %s0 = inlined_call_operand.vmem [shape: f32[8,256,128], index: 0, kind: input, shape index: {}]
  %s1 = inlined_call_operand.vmem [shape: f32[128,128], index: 1, kind: input, shape index: {}]
  %s2 = inlined_call_operand.vmem [shape: f32[1,128], index: 2, kind: input, shape index: {}]
  %s3 = inlined_call_operand.vmem [shape: f32[128,128], index: 3, kind: input, shape index: {}]
  %s4 = inlined_call_operand.vmem [shape: f32[1,128], index: 4, kind: input, shape index: {}]
  %s5 = inlined_call_operand.vmem [shape: f32[128,128], index: 5, kind: input, shape index: {}]
  %s6 = inlined_call_operand.vmem [shape: f32[1,128], index: 6, kind: input, shape index: {}]
  %s7 = inlined_call_operand.hbm [shape: f32[8,1,128], index: 7, kind: output, shape index: {0}]
  %s8 = inlined_call_operand.vmem [shape: f32[8,1,128], index: 8, kind: output, shape index: {1}]
  %9 = xla_tuple %s7, %s8
  %s10 = sld [smem:[#allocation0]]
  $region69: #{moco_forward.3} parent=0
    _
  %s12 = ssub.s32 1, %s10
  %s13 = scalar_select 0, %s12, %s10
  $region1: #{moco_forward.3} parent=0
    #allocation2 [shape = 'u8[1024]{0}', space=vmem, size = 0x400, scoped, tag = 'output window, operand 0']
    #allocation3 [shape = 's32[2]{0}', space=sflag, size = 0x8, scoped, tag = 'scoped memory for moco_forward.3']
    %14 = vsyncpa [#allocation3], 0
    %s15 = scalar_lea.sflag [#allocation3], 1
    %16 = vsyncpa %s15, 0
    loop: start=0, step=1, limit=10
    $region2: #{moco_forward.3} parent=1 // loop_pre_header
      _
    $region3: #{moco_forward.3} parent=1 // loop_header
      %s18 = sphi 0, %s22
      %p19 = scmp.ge.s32.totalorder %s18, 10
      %s28 = sphi 0, %s30
      %s31 = sphi 0, %s28
      %s32 = sphi 0, %s31
      %s48 = sphi 0, %s32
      %s52 = sphi 0, %s52
      %s54 = sphi 0, %s52
      %s55 = sphi 0, %s54
      %s69 = sphi 0, %s55
      %s73 = sphi 0, %s73
      %s75 = sphi 0, %s73
      %s76 = sphi 0, %s75
      %s90 = sphi 0, %s76
      %s94 = sphi 0, %s94
      %s96 = sphi 0, %s94
      %s97 = sphi 0, %s96
      %s111 = sphi 0, %s97
      %s115 = sphi 0, %s115
      %s117 = sphi 0, %s115
      %s118 = sphi 0, %s117
      %s132 = sphi 0, %s118
      %s136 = sphi 0, %s136
      %s138 = sphi 0, %s136
      %s139 = sphi 0, %s138
      %s153 = sphi 0, %s139
      %s157 = sphi 0, %s157
      %s159 = sphi 0, %s157
      %s160 = sphi 0, %s159
      %s174 = sphi 0, %s160
      %s180 = sphi 0, %s182
      %s183 = sphi 0, %s180
      %s184 = sphi 0, %s183
      %s200 = sphi 0, %s184
      %s206 = sphi 0, %s208
      %s209 = sphi 0, %s206
      %s210 = sphi 0, %s209
      %s226 = sphi 0, %s210
    $region4: #{moco_forward.3} parent=1 // loop_header_branch
      %21 = sbr.rel (%p19) target = $region8
    $region5: #{moco_forward.3} parent=1 // loop_body
      %s23 = ssub.s32 %s18, 1
      %s24 = ssub.s32 %s18, 2
      %s25 = sadd.s32 %s18, 1
      %s26 = ssub.s32 %s18, %s25
      %p27 = scmp.eq.s32.totalorder %s26, 0
      %s29 = sadd.s32 %s28, 1
      %s30 = scalar_select %p27, %s28, %s29
      %p33 = pneg %p27
      %p34 = scmp.eq.s32.totalorder %s18, 7
      %p35 = por %p33, %p34
      %p36 = scmp.ne.s32.totalorder %s28, %s31
      %p37 = scmp.eq.s32.totalorder %s18, 0
      %p38 = por %p36, %p37
      %p39 = scmp.ne.s32.totalorder %s28, %s31
      %p40 = scmp.eq.s32.totalorder %s23, 7
      %p41 = por %p39, %p40
      %p42 = scmp.ne.s32.totalorder %s31, %s32
      %p43 = scmp.eq.s32.totalorder %s23, 0
      %p44 = por %p42, %p43
      %p45 = scmp.ne.s32.totalorder %s31, %s32
      %p46 = scmp.eq.s32.totalorder %s24, 7
      %p47 = por %p45, %p46
      %p49 = scmp.ne.s32.totalorder %s32, %s48
      %p50 = scmp.eq.s32.totalorder %s24, 0
      %p51 = por %p49, %p50
      %s53 = sadd.s32 %s52, 1
      %p56 = scmp.eq.s32.totalorder %s18, 7
      %p57 = scmp.ne.s32.totalorder %s52, %s54
      %p58 = scmp.eq.s32.totalorder %s18, 0
      %p59 = por %p57, %p58
      %p60 = scmp.ne.s32.totalorder %s52, %s54
      %p61 = scmp.eq.s32.totalorder %s23, 7
      %p62 = por %p60, %p61
      %p63 = scmp.ne.s32.totalorder %s54, %s55
      %p64 = scmp.eq.s32.totalorder %s23, 0
      %p65 = por %p63, %p64
      %p66 = scmp.ne.s32.totalorder %s54, %s55
      %p67 = scmp.eq.s32.totalorder %s24, 7
      %p68 = por %p66, %p67
      %p70 = scmp.ne.s32.totalorder %s55, %s69
      %p71 = scmp.eq.s32.totalorder %s24, 0
      %p72 = por %p70, %p71
      %s74 = sadd.s32 %s73, 1
      %p77 = scmp.eq.s32.totalorder %s18, 7
      %p78 = scmp.ne.s32.totalorder %s73, %s75
      %p79 = scmp.eq.s32.totalorder %s18, 0
      %p80 = por %p78, %p79
      %p81 = scmp.ne.s32.totalorder %s73, %s75
      %p82 = scmp.eq.s32.totalorder %s23, 7
      %p83 = por %p81, %p82
      %p84 = scmp.ne.s32.totalorder %s75, %s76
      %p85 = scmp.eq.s32.totalorder %s23, 0
      %p86 = por %p84, %p85
      %p87 = scmp.ne.s32.totalorder %s75, %s76
      %p88 = scmp.eq.s32.totalorder %s24, 7
      %p89 = por %p87, %p88
      %p91 = scmp.ne.s32.totalorder %s76, %s90
      %p92 = scmp.eq.s32.totalorder %s24, 0
      %p93 = por %p91, %p92
      %s95 = sadd.s32 %s94, 1
      %p98 = scmp.eq.s32.totalorder %s18, 7
      %p99 = scmp.ne.s32.totalorder %s94, %s96
      %p100 = scmp.eq.s32.totalorder %s18, 0
      %p101 = por %p99, %p100
      %p102 = scmp.ne.s32.totalorder %s94, %s96
      %p103 = scmp.eq.s32.totalorder %s23, 7
      %p104 = por %p102, %p103
      %p105 = scmp.ne.s32.totalorder %s96, %s97
      %p106 = scmp.eq.s32.totalorder %s23, 0
      %p107 = por %p105, %p106
      %p108 = scmp.ne.s32.totalorder %s96, %s97
      %p109 = scmp.eq.s32.totalorder %s24, 7
      %p110 = por %p108, %p109
      %p112 = scmp.ne.s32.totalorder %s97, %s111
      %p113 = scmp.eq.s32.totalorder %s24, 0
      %p114 = por %p112, %p113
      %s116 = sadd.s32 %s115, 1
      %p119 = scmp.eq.s32.totalorder %s18, 7
      %p120 = scmp.ne.s32.totalorder %s115, %s117
      %p121 = scmp.eq.s32.totalorder %s18, 0
      %p122 = por %p120, %p121
      %p123 = scmp.ne.s32.totalorder %s115, %s117
      %p124 = scmp.eq.s32.totalorder %s23, 7
      %p125 = por %p123, %p124
      %p126 = scmp.ne.s32.totalorder %s117, %s118
      %p127 = scmp.eq.s32.totalorder %s23, 0
      %p128 = por %p126, %p127
      %p129 = scmp.ne.s32.totalorder %s117, %s118
      %p130 = scmp.eq.s32.totalorder %s24, 7
      %p131 = por %p129, %p130
      %p133 = scmp.ne.s32.totalorder %s118, %s132
      %p134 = scmp.eq.s32.totalorder %s24, 0
      %p135 = por %p133, %p134
      %s137 = sadd.s32 %s136, 1
      %p140 = scmp.eq.s32.totalorder %s18, 7
      %p141 = scmp.ne.s32.totalorder %s136, %s138
      %p142 = scmp.eq.s32.totalorder %s18, 0
      %p143 = por %p141, %p142
      %p144 = scmp.ne.s32.totalorder %s136, %s138
      %p145 = scmp.eq.s32.totalorder %s23, 7
      %p146 = por %p144, %p145
      %p147 = scmp.ne.s32.totalorder %s138, %s139
      %p148 = scmp.eq.s32.totalorder %s23, 0
      %p149 = por %p147, %p148
      %p150 = scmp.ne.s32.totalorder %s138, %s139
      %p151 = scmp.eq.s32.totalorder %s24, 7
      %p152 = por %p150, %p151
      %p154 = scmp.ne.s32.totalorder %s139, %s153
      %p155 = scmp.eq.s32.totalorder %s24, 0
      %p156 = por %p154, %p155
      %s158 = sadd.s32 %s157, 1
      %p161 = scmp.eq.s32.totalorder %s18, 7
      %p162 = scmp.ne.s32.totalorder %s157, %s159
      %p163 = scmp.eq.s32.totalorder %s18, 0
      %p164 = por %p162, %p163
      %p165 = scmp.ne.s32.totalorder %s157, %s159
      %p166 = scmp.eq.s32.totalorder %s23, 7
      %p167 = por %p165, %p166
      %p168 = scmp.ne.s32.totalorder %s159, %s160
      %p169 = scmp.eq.s32.totalorder %s23, 0
      %p170 = por %p168, %p169
      %p171 = scmp.ne.s32.totalorder %s159, %s160
      %p172 = scmp.eq.s32.totalorder %s24, 7
      %p173 = por %p171, %p172
      %p175 = scmp.ne.s32.totalorder %s160, %s174
      %p176 = scmp.eq.s32.totalorder %s24, 0
      %p177 = por %p175, %p176
      %s178 = ssub.s32 %s18, %s25
      %p179 = scmp.eq.s32.totalorder %s178, 0
      %s181 = sadd.s32 %s180, 1
      %s182 = scalar_select %p179, %s180, %s181
      %p185 = pneg %p179
      %p186 = scmp.eq.s32.totalorder %s18, 7
      %p187 = por %p185, %p186
      %p188 = scmp.ne.s32.totalorder %s180, %s183
      %p189 = scmp.eq.s32.totalorder %s18, 0
      %p190 = por %p188, %p189
      %p191 = scmp.ne.s32.totalorder %s180, %s183
      %p192 = scmp.eq.s32.totalorder %s23, 7
      %p193 = por %p191, %p192
      %p194 = scmp.ne.s32.totalorder %s183, %s184
      %p195 = scmp.eq.s32.totalorder %s23, 0
      %p196 = por %p194, %p195
      %p197 = scmp.ne.s32.totalorder %s183, %s184
      %p198 = scmp.eq.s32.totalorder %s24, 7
      %p199 = por %p197, %p198
      %p201 = scmp.ne.s32.totalorder %s184, %s200
      %p202 = scmp.eq.s32.totalorder %s24, 0
      %p203 = por %p201, %p202
      %s204 = ssub.s32 %s18, %s25
      %p205 = scmp.eq.s32.totalorder %s204, 0
      %s207 = sadd.s32 %s206, 1
      %s208 = scalar_select %p205, %s206, %s207
      %p211 = pneg %p205
      %p212 = scmp.eq.s32.totalorder %s18, 7
      %p213 = por %p211, %p212
      %p214 = scmp.ne.s32.totalorder %s206, %s209
      %p215 = scmp.eq.s32.totalorder %s18, 0
      %p216 = por %p214, %p215
      %p217 = scmp.ne.s32.totalorder %s206, %s209
      %p218 = scmp.eq.s32.totalorder %s23, 7
      %p219 = por %p217, %p218
      %p220 = scmp.ne.s32.totalorder %s209, %s210
      %p221 = scmp.eq.s32.totalorder %s23, 0
      %p222 = por %p220, %p221
      %p223 = scmp.ne.s32.totalorder %s209, %s210
      %p224 = scmp.eq.s32.totalorder %s24, 7
      %p225 = por %p223, %p224
      %p227 = scmp.ne.s32.totalorder %s210, %s226
      %p228 = scmp.eq.s32.totalorder %s24, 0
      %p229 = por %p227, %p228
      %p230 = scmp.le.s32.totalorder 1, %s18
      %p231 = scmp.lt.s32.totalorder %s18, 9
      %p232 = pnand %p230, %p231
      %p233 = pneg %p232
      // Predicated region
      $region9: #{moco_forward.3} parent=5 // pred_check
        _
      $region10: #{moco_forward.3} parent=5 // pred_check_branch
        %235 = sbr.rel (%p232) target = $region12
      $region11: #{moco_forward.3} parent=5 // pred_region
        %s236 = ssub.s32 %s18, 1
        // Predicated region
        $region13: #{moco_forward.3} parent=11 // pred_check
          %p237 = pneg %p65
        $region14: #{moco_forward.3} parent=11 // pred_check_branch
          %239 = sbr.rel (%p237) target = $region16
        $region15: #{moco_forward.3} parent=11 // pred_region
          _
        $region16: #{moco_forward.3} parent=11 // pred_fallthru
          _
        // Predicated region
        $region17: #{moco_forward.3} parent=11 // pred_check
          %p240 = pneg %p86
        $region18: #{moco_forward.3} parent=11 // pred_check_branch
          %242 = sbr.rel (%p240) target = $region20
        $region19: #{moco_forward.3} parent=11 // pred_region
          _
        $region20: #{moco_forward.3} parent=11 // pred_fallthru
          _
        // Predicated region
        $region21: #{moco_forward.3} parent=11 // pred_check
          %p243 = pneg %p107
        $region22: #{moco_forward.3} parent=11 // pred_check_branch
          %245 = sbr.rel (%p243) target = $region24
        $region23: #{moco_forward.3} parent=11 // pred_region
          _
        $region24: #{moco_forward.3} parent=11 // pred_fallthru
          _
        // Predicated region
        $region25: #{moco_forward.3} parent=11 // pred_check
          %p246 = pneg %p128
        $region26: #{moco_forward.3} parent=11 // pred_check_branch
          %248 = sbr.rel (%p246) target = $region28
        $region27: #{moco_forward.3} parent=11 // pred_region
          _
        $region28: #{moco_forward.3} parent=11 // pred_fallthru
          _
        // Predicated region
        $region29: #{moco_forward.3} parent=11 // pred_check
          %p249 = pneg %p149
        $region30: #{moco_forward.3} parent=11 // pred_check_branch
          %251 = sbr.rel (%p249) target = $region32
        $region31: #{moco_forward.3} parent=11 // pred_region
          _
        $region32: #{moco_forward.3} parent=11 // pred_fallthru
          _
        // Predicated region
        $region33: #{moco_forward.3} parent=11 // pred_check
          %p252 = pneg %p170
        $region34: #{moco_forward.3} parent=11 // pred_check_branch
          %254 = sbr.rel (%p252) target = $region36
        $region35: #{moco_forward.3} parent=11 // pred_region
          _
        $region36: #{moco_forward.3} parent=11 // pred_fallthru
          _
      $region12: #{moco_forward.3} parent=5 // pred_fallthru
        _
      %p255 = scmp.lt.s32.totalorder %s18, 8
      // Predicated region
      $region37: #{moco_forward.3} parent=5 // pred_check
        %p256 = pneg %p255
      $region38: #{moco_forward.3} parent=5 // pred_check_branch
        %258 = sbr.rel (%p256) target = $region40
      $region39: #{moco_forward.3} parent=5 // pred_region
        // Predicated region
        $region41: #{moco_forward.3} parent=39 // pred_check
          %p259 = pneg %p38
        $region42: #{moco_forward.3} parent=39 // pred_check_branch
          %261 = sbr.rel (%p259) target = $region44
        $region43: #{moco_forward.3} parent=39 // pred_region
          %p262 = scmp.lt.s32.totalorder %s18, 7
          %s263 = scalar_select %p262, %s18, 7
          %s264 = smul.addr %s263, 32
          %s265 = smul.addr %s264, 8
          %s266 = scalar_lea.vmem %s0, %s265
        $region44: #{moco_forward.3} parent=39 // pred_fallthru
          _
      $region40: #{moco_forward.3} parent=5 // pred_fallthru
        _
      %p267 = scmp.le.s32.totalorder 1, %s18
      %p268 = scmp.lt.s32.totalorder %s18, 9
      %p269 = pnand %p267, %p268
      %p270 = pneg %p269
      // Predicated region
      $region45: #{moco_forward.3} parent=5 // pred_check
        _
      $region46: #{moco_forward.3} parent=5 // pred_check_branch
        %272 = sbr.rel (%p269) target = $region48
      $region47: #{moco_forward.3} parent=5 // pred_region
        %s273 = ssub.s32 %s18, 1
        %p274 = scmp.lt.s32.totalorder %s23, 7
        %s275 = scalar_select %p274, %s23, 7
        %s276 = smul.addr %s275, 32
        %s277 = smul.addr %s276, 8
        %s278 = scalar_lea.vmem %s0, %s277
        %p279 = pneg %p44
        %p280 = pneg %p41
        %p281 = pneg %p65
        %p282 = pneg %p62
        %p283 = pneg %p86
        %p284 = pneg %p83
        %p285 = pneg %p107
        %p286 = pneg %p104
        %p287 = pneg %p128
        %p288 = pneg %p125
        %p289 = pneg %p149
        %p290 = pneg %p146
        %p291 = pneg %p170
        %p292 = pneg %p167
        %p293 = pneg %p196
        %p294 = pneg %p193
        %s295 = sand.u32 %s183, 1
        %s296 = scalar_lea.sflag [#allocation3], %s295
        %s297 = sand.u32 %s183, 1
        %s298 = scalar_lea.vmem [#allocation2], %s297
        %p299 = pneg %p222
        %p300 = pneg %p219
        %p301 = scmp.lt.s32.totalorder %s23, 7
        %s302 = scalar_select %p301, %s23, 7
        %s303 = scalar_lea.vmem %s8, %s302
        %p304 = scmp.lt.s32.totalorder %s23, 7
        %s305 = scalar_select %p304, %s23, 7
        %s306 = smul.addr %s305, 32
        %s307 = smul.addr %s306, 8
        %s308 = scalar_lea.vmem %s0, %s307
        %p309 = scmp.lt.s32.totalorder %s23, 7
        %s310 = scalar_select %p309, %s23, 7
        %s311 = scalar_lea.vmem %s8, %s310
        %v312 = vld [vmem:[%s308] sm:$0xff]
        %v313 = vld [vmem:[%s308 + $0x8] sm:$0xff]
        %v314 = vld [vmem:[%s308 + $0x10] sm:$0xff]
        %v315 = vld [vmem:[%s308 + $0x18] sm:$0xff]
        %v316 = vld [vmem:[%s308 + $0x20] sm:$0xff]
        %v317 = vld [vmem:[%s308 + $0x28] sm:$0xff]
        %v318 = vld [vmem:[%s308 + $0x30] sm:$0xff]
        %v319 = vld [vmem:[%s308 + $0x38] sm:$0xff]
        %v320 = vld [vmem:[%s308 + $0x40] sm:$0xff]
        %v321 = vld [vmem:[%s308 + $0x48] sm:$0xff]
        %v322 = vld [vmem:[%s308 + $0x50] sm:$0xff]
        %v323 = vld [vmem:[%s308 + $0x58] sm:$0xff]
        %v324 = vld [vmem:[%s308 + $0x60] sm:$0xff]
        %v325 = vld [vmem:[%s308 + $0x68] sm:$0xff]
        %v326 = vld [vmem:[%s308 + $0x70] sm:$0xff]
        %v327 = vld [vmem:[%s308 + $0x78] sm:$0xff]
        %v328 = vld [vmem:[%s308 + $0x80] sm:$0xff]
        %v329 = vld [vmem:[%s308 + $0x88] sm:$0xff]
        %v330 = vld [vmem:[%s308 + $0x90] sm:$0xff]
        %v331 = vld [vmem:[%s308 + $0x98] sm:$0xff]
        %v332 = vld [vmem:[%s308 + $0xa0] sm:$0xff]
        %v333 = vld [vmem:[%s308 + $0xa8] sm:$0xff]
        %v334 = vld [vmem:[%s308 + $0xb0] sm:$0xff]
        %v335 = vld [vmem:[%s308 + $0xb8] sm:$0xff]
        %v336 = vld [vmem:[%s308 + $0xc0] sm:$0xff]
        %v337 = vld [vmem:[%s308 + $0xc8] sm:$0xff]
        %v338 = vld [vmem:[%s308 + $0xd0] sm:$0xff]
        %v339 = vld [vmem:[%s308 + $0xd8] sm:$0xff]
        %v340 = vld [vmem:[%s308 + $0xe0] sm:$0xff]
        %v341 = vld [vmem:[%s308 + $0xe8] sm:$0xff]
        %v342 = vld [vmem:[%s308 + $0xf0] sm:$0xff]
        %v343 = vld [vmem:[%s308 + $0xf8] sm:$0xff]
        %v344 = vld [vmem:[%s1] sm:$0xff]
        %v345 = vld [vmem:[%s1 + $0x8] sm:$0xff]
        %v346 = vld [vmem:[%s1 + $0x10] sm:$0xff]
        %v347 = vld [vmem:[%s1 + $0x18] sm:$0xff]
        %v348 = vld [vmem:[%s1 + $0x20] sm:$0xff]
        %v349 = vld [vmem:[%s1 + $0x28] sm:$0xff]
        %v350 = vld [vmem:[%s1 + $0x30] sm:$0xff]
        %v351 = vld [vmem:[%s1 + $0x38] sm:$0xff]
        %v352 = vld [vmem:[%s1 + $0x40] sm:$0xff]
        %v353 = vld [vmem:[%s1 + $0x48] sm:$0xff]
        %v354 = vld [vmem:[%s1 + $0x50] sm:$0xff]
        %v355 = vld [vmem:[%s1 + $0x58] sm:$0xff]
        %v356 = vld [vmem:[%s1 + $0x60] sm:$0xff]
        %v357 = vld [vmem:[%s1 + $0x68] sm:$0xff]
        %v358 = vld [vmem:[%s1 + $0x70] sm:$0xff]
        %v359 = vld [vmem:[%s1 + $0x78] sm:$0xff]
        %v360 = vld [vmem:[%s2] sm:$0x1]
        %v362 = vperm.slane %v360, 0
        %364 = vmatpush.msra.mxu0 %v359
        %365 = vmatpush.msra.mxu0 %v358
        %366 = vmatpush.msra.mxu0 %v357
        %367 = vmatpush.msra.mxu0 %v356
        %368 = vmatpush.msra.mxu0 %v355
        %369 = vmatpush.msra.mxu0 %v354
        %370 = vmatpush.msra.mxu0 %v353
        %371 = vmatpush.msra.mxu0 %v352
        %372 = vmatpush.msra.mxu0 %v351
        %373 = vmatpush.msra.mxu0 %v350
        %374 = vmatpush.msra.mxu0 %v349
        %375 = vmatpush.msra.mxu0 %v348
        %376 = vmatpush.msra.mxu0 %v347
        %377 = vmatpush.msra.mxu0 %v346
        %378 = vmatpush.msra.mxu0 %v345
        %379 = vmatpush.msra.mxu0 %v344
        %380 = vmatmul.f32.gmra.mxu0 %v312
        %v381 = vpop.f32.mrf.mxu0
        %v382 = vadd.f32 %v362, %v381
        %383 = vmatmul.f32.gmra.mxu0 %v313
        %v384 = vpop.f32.mrf.mxu0
        %v385 = vadd.f32 %v362, %v384
        %386 = vmatmul.f32.gmra.mxu0 %v314
        %v387 = vpop.f32.mrf.mxu0
        %v388 = vadd.f32 %v362, %v387
        %389 = vmatmul.f32.gmra.mxu0 %v315
        %v390 = vpop.f32.mrf.mxu0
        %v391 = vadd.f32 %v362, %v390
        %392 = vmatmul.f32.gmra.mxu0 %v316
        %v393 = vpop.f32.mrf.mxu0
        %v394 = vadd.f32 %v362, %v393
        %395 = vmatmul.f32.gmra.mxu0 %v317
        %v396 = vpop.f32.mrf.mxu0
        %v397 = vadd.f32 %v362, %v396
        %398 = vmatmul.f32.gmra.mxu0 %v318
        %v399 = vpop.f32.mrf.mxu0
        %v400 = vadd.f32 %v362, %v399
        %401 = vmatmul.f32.gmra.mxu0 %v319
        %v402 = vpop.f32.mrf.mxu0
        %v403 = vadd.f32 %v362, %v402
        %404 = vmatmul.f32.gmra.mxu0 %v320
        %v405 = vpop.f32.mrf.mxu0
        %v406 = vadd.f32 %v362, %v405
        %407 = vmatmul.f32.gmra.mxu0 %v321
        %v408 = vpop.f32.mrf.mxu0
        %v409 = vadd.f32 %v362, %v408
        %410 = vmatmul.f32.gmra.mxu0 %v322
        %v411 = vpop.f32.mrf.mxu0
        %v412 = vadd.f32 %v362, %v411
        %413 = vmatmul.f32.gmra.mxu0 %v323
        %v414 = vpop.f32.mrf.mxu0
        %v415 = vadd.f32 %v362, %v414
        %416 = vmatmul.f32.gmra.mxu0 %v324
        %v417 = vpop.f32.mrf.mxu0
        %v418 = vadd.f32 %v362, %v417
        %419 = vmatmul.f32.gmra.mxu0 %v325
        %v420 = vpop.f32.mrf.mxu0
        %v421 = vadd.f32 %v362, %v420
        %422 = vmatmul.f32.gmra.mxu0 %v326
        %v423 = vpop.f32.mrf.mxu0
        %v424 = vadd.f32 %v362, %v423
        %425 = vmatmul.f32.gmra.mxu0 %v327
        %v426 = vpop.f32.mrf.mxu0
        %v427 = vadd.f32 %v362, %v426
        %428 = vmatmul.f32.gmra.mxu0 %v328
        %v429 = vpop.f32.mrf.mxu0
        %v430 = vadd.f32 %v362, %v429
        %431 = vmatmul.f32.gmra.mxu0 %v329
        %v432 = vpop.f32.mrf.mxu0
        %v433 = vadd.f32 %v362, %v432
        %434 = vmatmul.f32.gmra.mxu0 %v330
        %v435 = vpop.f32.mrf.mxu0
        %v436 = vadd.f32 %v362, %v435
        %437 = vmatmul.f32.gmra.mxu0 %v331
        %v438 = vpop.f32.mrf.mxu0
        %v439 = vadd.f32 %v362, %v438
        %440 = vmatmul.f32.gmra.mxu0 %v332
        %v441 = vpop.f32.mrf.mxu0
        %v442 = vadd.f32 %v362, %v441
        %443 = vmatmul.f32.gmra.mxu0 %v333
        %v444 = vpop.f32.mrf.mxu0
        %v445 = vadd.f32 %v362, %v444
        %446 = vmatmul.f32.gmra.mxu0 %v334
        %v447 = vpop.f32.mrf.mxu0
        %v448 = vadd.f32 %v362, %v447
        %449 = vmatmul.f32.gmra.mxu0 %v335
        %v450 = vpop.f32.mrf.mxu0
        %v451 = vadd.f32 %v362, %v450
        %452 = vmatmul.f32.gmra.mxu0 %v336
        %v453 = vpop.f32.mrf.mxu0
        %v454 = vadd.f32 %v362, %v453
        %455 = vmatmul.f32.gmra.mxu0 %v337
        %v456 = vpop.f32.mrf.mxu0
        %v457 = vadd.f32 %v362, %v456
        %458 = vmatmul.f32.gmra.mxu0 %v338
        %v459 = vpop.f32.mrf.mxu0
        %v460 = vadd.f32 %v362, %v459
        %461 = vmatmul.f32.gmra.mxu0 %v339
        %v462 = vpop.f32.mrf.mxu0
        %v463 = vadd.f32 %v362, %v462
        %464 = vmatmul.f32.gmra.mxu0 %v340
        %v465 = vpop.f32.mrf.mxu0
        %v466 = vadd.f32 %v362, %v465
        %467 = vmatmul.f32.gmra.mxu0 %v341
        %v468 = vpop.f32.mrf.mxu0
        %v469 = vadd.f32 %v362, %v468
        %470 = vmatmul.f32.gmra.mxu0 %v342
        %v471 = vpop.f32.mrf.mxu0
        %v472 = vadd.f32 %v362, %v471
        %473 = vmatmul.f32.gmra.mxu0 %v343
        %v474 = vpop.f32.mrf.mxu0
        %v475 = vadd.f32 %v362, %v474
        %476 = vdwg.mxu0
        %v477 = vmax.f32 %v382, 0.0
        %v478 = vmax.f32 %v385, 0.0
        %v479 = vmax.f32 %v388, 0.0
        %v480 = vmax.f32 %v391, 0.0
        %v481 = vmax.f32 %v394, 0.0
        %v482 = vmax.f32 %v397, 0.0
        %v483 = vmax.f32 %v400, 0.0
        %v484 = vmax.f32 %v403, 0.0
        %v485 = vmax.f32 %v406, 0.0
        %v486 = vmax.f32 %v409, 0.0
        %v487 = vmax.f32 %v412, 0.0
        %v488 = vmax.f32 %v415, 0.0
        %v489 = vmax.f32 %v418, 0.0
        %v490 = vmax.f32 %v421, 0.0
        %v491 = vmax.f32 %v424, 0.0
        %v492 = vmax.f32 %v427, 0.0
        %v493 = vmax.f32 %v430, 0.0
        %v494 = vmax.f32 %v433, 0.0
        %v495 = vmax.f32 %v436, 0.0
        %v496 = vmax.f32 %v439, 0.0
        %v497 = vmax.f32 %v442, 0.0
        %v498 = vmax.f32 %v445, 0.0
        %v499 = vmax.f32 %v448, 0.0
        %v500 = vmax.f32 %v451, 0.0
        %v501 = vmax.f32 %v454, 0.0
        %v502 = vmax.f32 %v457, 0.0
        %v503 = vmax.f32 %v460, 0.0
        %v504 = vmax.f32 %v463, 0.0
        %v505 = vmax.f32 %v466, 0.0
        %v506 = vmax.f32 %v469, 0.0
        %v507 = vmax.f32 %v472, 0.0
        %v508 = vmax.f32 %v475, 0.0
        %v509 = vadd.f32 %v477, %v478
        %v510 = vadd.f32 %v509, %v479
        %v511 = vadd.f32 %v510, %v480
        %v512 = vadd.f32 %v511, %v481
        %v513 = vadd.f32 %v512, %v482
        %v514 = vadd.f32 %v513, %v483
        %v515 = vadd.f32 %v514, %v484
        %v516 = vadd.f32 %v515, %v485
        %v517 = vadd.f32 %v516, %v486
        %v518 = vadd.f32 %v517, %v487
        %v519 = vadd.f32 %v518, %v488
        %v520 = vadd.f32 %v519, %v489
        %v521 = vadd.f32 %v520, %v490
        %v522 = vadd.f32 %v521, %v491
        %v523 = vadd.f32 %v522, %v492
        %v524 = vadd.f32 %v523, %v493
        %v525 = vadd.f32 %v524, %v494
        %v526 = vadd.f32 %v525, %v495
        %v527 = vadd.f32 %v526, %v496
        %v528 = vadd.f32 %v527, %v497
        %v529 = vadd.f32 %v528, %v498
        %v530 = vadd.f32 %v529, %v499
        %v531 = vadd.f32 %v530, %v500
        %v532 = vadd.f32 %v531, %v501
        %v533 = vadd.f32 %v532, %v502
        %v534 = vadd.f32 %v533, %v503
        %v535 = vadd.f32 %v534, %v504
        %v536 = vadd.f32 %v535, %v505
        %v537 = vadd.f32 %v536, %v506
        %v538 = vadd.f32 %v537, %v507
        %v539 = vadd.f32 %v538, %v508
        %v540 = vrot.slane %v539, 4
        %v541 = vadd.f32 %v539, %v540
        %v542 = vrot.slane %v541, 2
        %v543 = vadd.f32 %v541, %v542
        %v544 = vrot.slane %v543, 1
        %v545 = vadd.f32 %v543, %v544
        %v546 = vmul.f32 %v545, 0.00390625
        %v547 = vld [vmem:[%s3] sm:$0xff]
        %v548 = vld [vmem:[%s3 + $0x8] sm:$0xff]
        %v549 = vld [vmem:[%s3 + $0x10] sm:$0xff]
        %v550 = vld [vmem:[%s3 + $0x18] sm:$0xff]
        %v551 = vld [vmem:[%s3 + $0x20] sm:$0xff]
        %v552 = vld [vmem:[%s3 + $0x28] sm:$0xff]
        %v553 = vld [vmem:[%s3 + $0x30] sm:$0xff]
        %v554 = vld [vmem:[%s3 + $0x38] sm:$0xff]
        %v555 = vld [vmem:[%s3 + $0x40] sm:$0xff]
        %v556 = vld [vmem:[%s3 + $0x48] sm:$0xff]
        %v557 = vld [vmem:[%s3 + $0x50] sm:$0xff]
        %v558 = vld [vmem:[%s3 + $0x58] sm:$0xff]
        %v559 = vld [vmem:[%s3 + $0x60] sm:$0xff]
        %v560 = vld [vmem:[%s3 + $0x68] sm:$0xff]
        %v561 = vld [vmem:[%s3 + $0x70] sm:$0xff]
        %v562 = vld [vmem:[%s3 + $0x78] sm:$0xff]
        %v563 = vld [vmem:[%s4] sm:$0x1]
        %564 = vmatpush.msra.mxu0 %v562
        %565 = vmatpush.msra.mxu0 %v561
        %566 = vmatpush.msra.mxu0 %v560
        %567 = vmatpush.msra.mxu0 %v559
        %568 = vmatpush.msra.mxu0 %v558
        %569 = vmatpush.msra.mxu0 %v557
        %570 = vmatpush.msra.mxu0 %v556
        %571 = vmatpush.msra.mxu0 %v555
        %572 = vmatpush.msra.mxu0 %v554
        %573 = vmatpush.msra.mxu0 %v553
        %574 = vmatpush.msra.mxu0 %v552
        %575 = vmatpush.msra.mxu0 %v551
        %576 = vmatpush.msra.mxu0 %v550
        %577 = vmatpush.msra.mxu0 %v549
        %578 = vmatpush.msra.mxu0 %v548
        %579 = vmatpush.msra.mxu0 %v547
        %580 = vmatmul.f32.gmra.mxu0 %v546
        %v581 = vpop.f32.mrf.mxu0
        %v582 = vadd.f32 %v563, %v581
        %583 = vdwg.mxu0
        %v584 = vmax.f32 %v582, 0.0
        %v585 = vld [vmem:[%s5] sm:$0xff]
        %v586 = vld [vmem:[%s5 + $0x8] sm:$0xff]
        %v587 = vld [vmem:[%s5 + $0x10] sm:$0xff]
        %v588 = vld [vmem:[%s5 + $0x18] sm:$0xff]
        %v589 = vld [vmem:[%s5 + $0x20] sm:$0xff]
        %v590 = vld [vmem:[%s5 + $0x28] sm:$0xff]
        %v591 = vld [vmem:[%s5 + $0x30] sm:$0xff]
        %v592 = vld [vmem:[%s5 + $0x38] sm:$0xff]
        %v593 = vld [vmem:[%s5 + $0x40] sm:$0xff]
        %v594 = vld [vmem:[%s5 + $0x48] sm:$0xff]
        %v595 = vld [vmem:[%s5 + $0x50] sm:$0xff]
        %v596 = vld [vmem:[%s5 + $0x58] sm:$0xff]
        %v597 = vld [vmem:[%s5 + $0x60] sm:$0xff]
        %v598 = vld [vmem:[%s5 + $0x68] sm:$0xff]
        %v599 = vld [vmem:[%s5 + $0x70] sm:$0xff]
        %v600 = vld [vmem:[%s5 + $0x78] sm:$0xff]
        %v601 = vld [vmem:[%s6] sm:$0x1]
        %602 = vmatpush.msra.mxu0 %v600
        %603 = vmatpush.msra.mxu0 %v599
        %604 = vmatpush.msra.mxu0 %v598
        %605 = vmatpush.msra.mxu0 %v597
        %606 = vmatpush.msra.mxu0 %v596
        %607 = vmatpush.msra.mxu0 %v595
        %608 = vmatpush.msra.mxu0 %v594
        %609 = vmatpush.msra.mxu0 %v593
        %610 = vmatpush.msra.mxu0 %v592
        %611 = vmatpush.msra.mxu0 %v591
        %612 = vmatpush.msra.mxu0 %v590
        %613 = vmatpush.msra.mxu0 %v589
        %614 = vmatpush.msra.mxu0 %v588
        %615 = vmatpush.msra.mxu0 %v587
        %616 = vmatpush.msra.mxu0 %v586
        %617 = vmatpush.msra.mxu0 %v585
        %618 = vmatmul.f32.gmra.mxu0 %v584
        %v619 = vpop.f32.mrf.mxu0
        %v620 = vadd.f32 %v601, %v619
        %621 = vdwg.mxu0
        %622 = vst [vmem:[%s298] sm:$0x1] %v546
        %623 = vst [vmem:[%s311] sm:$0x1] %v620
        %s624 = sand.u32 %s183, 1
        %s625 = scalar_lea.sflag [#allocation3], %s624
        %s626 = sand.u32 %s183, 1
        %s627 = scalar_lea.vmem [#allocation2], %s626
        %p628 = scmp.lt.s32.totalorder %s23, 7
        %s629 = scalar_select %p628, %s23, 7
        %s630 = scalar_lea.vmem %s8, %s629
        // Predicated region
        $region49: #{moco_forward.3} parent=47 // pred_check
          %p631 = pneg %p193
        $region50: #{moco_forward.3} parent=47 // pred_check_branch
          %633 = sbr.rel (%p631) target = $region52
        $region51: #{moco_forward.3} parent=47 // pred_region
          %635 = vsyncadd %s625, 0
          %s636 = scalar_lea.hbm %s7, %s23
          %s638 = sshll.u32 %s627, 4
          %s639 = int_to_ptr.vmem [resolvable:$true] %s638
          %s640 = sshll.u32 %s636, 4
          %s641 = int_to_ptr.hbm [resolvable:$true] %s640
          %643 = dma.vmem_to_hbm [thread:$0]  %s639, 16, %s641, %s625
        $region52: #{moco_forward.3} parent=47 // pred_fallthru
          _
        // Predicated region
        $region53: #{moco_forward.3} parent=47 // pred_check
          %p644 = pneg %p219
        $region54: #{moco_forward.3} parent=47 // pred_check_branch
          %646 = sbr.rel (%p644) target = $region56
        $region55: #{moco_forward.3} parent=47 // pred_region
          _
        $region56: #{moco_forward.3} parent=47 // pred_fallthru
          _
      $region48: #{moco_forward.3} parent=5 // pred_fallthru
        _
      %p647 = scmp.le.s32.totalorder 2, %s18
      // Predicated region
      $region57: #{moco_forward.3} parent=5 // pred_check
        %p648 = pneg %p647
      $region58: #{moco_forward.3} parent=5 // pred_check_branch
        %650 = sbr.rel (%p648) target = $region60
      $region59: #{moco_forward.3} parent=5 // pred_region
        %s651 = ssub.s32 %s18, 2
        // Predicated region
        $region61: #{moco_forward.3} parent=59 // pred_check
          %p652 = pneg %p199
        $region62: #{moco_forward.3} parent=59 // pred_check_branch
          %654 = sbr.rel (%p652) target = $region64
        $region63: #{moco_forward.3} parent=59 // pred_region
          %s655 = sand.u32 %s184, 1
          %s656 = scalar_lea.sflag [#allocation3], %s655
          %s657 = sand.u32 %s184, 1
          %s658 = scalar_lea.vmem [#allocation2], %s657
          %660 = dma.done %s656, 16
        $region64: #{moco_forward.3} parent=59 // pred_fallthru
          _
        // Predicated region
        $region65: #{moco_forward.3} parent=59 // pred_check
          %p661 = pneg %p225
        $region66: #{moco_forward.3} parent=59 // pred_check_branch
          %663 = sbr.rel (%p661) target = $region68
        $region67: #{moco_forward.3} parent=59 // pred_region
          %p664 = scmp.lt.s32.totalorder %s24, 7
          %s665 = scalar_select %p664, %s24, 7
          %s666 = scalar_lea.vmem %s8, %s665
        $region68: #{moco_forward.3} parent=59 // pred_fallthru
          _
      $region60: #{moco_forward.3} parent=5 // pred_fallthru
        _
    $region6: #{moco_forward.3} parent=1 // loop_footer
      %s22 = sadd.s32 1, %s18
    $region7: #{moco_forward.3} parent=1 // loop_footer_branch
      %17 = sbr.rel target = $region3
    $region8: #{moco_forward.3} parent=1 // loop_exit
      _
    %667 = vsyncpa [#allocation3], 1
    %s668 = scalar_lea.sflag [#allocation3], 1
    %669 = vsyncpa %s668, 1

// kernel: moco_forward.5
$region0: #{moco_forward.5}
  #allocation0 [shape = 'u32[]', space=smem, size = 0x4, offset = 0x4, fixed_abs, tag = 'smem constant byte address 0x4 - core index']
  #allocation1 [shape = 'u32[72,128]{1,0:T(1,128)}', space=vmem, size = 0x9000, scoped, tag = 'internal scratch']
  #allocation2 [shape = 's32[1]{0:T(128)S(6)}', space=smem, size = 0x200, scoped, tag = 'scoped memory for moco_forward.5']
  %s0 = inlined_call_operand.vmem [shape: f32[128,128], index: 0, kind: input, shape index: {}, may-alias: {0,5}]
  %s1 = inlined_call_operand.vmem [shape: f32[8,128], index: 1, kind: input, shape index: {}]
  %s2 = inlined_call_operand.vmem [shape: f32[8,128], index: 2, kind: input, shape index: {}]
  %s3 = inlined_call_operand.<no memory space> [shape: s32[1], index: 3, kind: input, shape index: {}]
  %s4 = inlined_call_operand.hbm [shape: f32[8,129], index: 4, kind: output, shape index: {0}]
  %s5 = inlined_call_operand.vmem [shape: f32[128,128], index: 5, kind: output, shape index: {1}, may-alias: {0,5}]
  %6 = xla_tuple %s4, %s5
  %s7 = sld [smem:[#allocation0]]
  $region34: #{moco_forward.5} parent=0
    _
  %s9 = ssub.s32 1, %s7
  %s10 = scalar_select 0, %s9, %s7
  %11 = sst [smem:[#allocation2]] %s3
  $region1: #{moco_forward.5} parent=0
    #allocation3 [shape = 'u8[8192]{0}', space=vmem, size = 0x2000, scoped, tag = 'output window, operand 0, single buffered']
    #allocation4 [shape = 's32[1]{0}', space=sflag, size = 0x4, scoped, tag = 'scoped memory for moco_forward.5']
    %12 = vsyncpa [#allocation4], 0
    // Predicated region
    $region2: #{moco_forward.5} parent=1 // pred_check
      _
    $region3: #{moco_forward.5} parent=1 // pred_check_branch
      %14 = sbr.rel (0) target = $region5
    $region4: #{moco_forward.5} parent=1 // pred_region
      _
    $region5: #{moco_forward.5} parent=1 // pred_fallthru
      _
    // Predicated region
    $region6: #{moco_forward.5} parent=1 // pred_check
      _
    $region7: #{moco_forward.5} parent=1 // pred_check_branch
      %16 = sbr.rel (0) target = $region9
    $region8: #{moco_forward.5} parent=1 // pred_region
      _
    $region9: #{moco_forward.5} parent=1 // pred_fallthru
      _
    // Predicated region
    $region10: #{moco_forward.5} parent=1 // pred_check
      _
    $region11: #{moco_forward.5} parent=1 // pred_check_branch
      %18 = sbr.rel (0) target = $region13
    $region12: #{moco_forward.5} parent=1 // pred_region
      _
    $region13: #{moco_forward.5} parent=1 // pred_fallthru
      _
    // Predicated region
    $region14: #{moco_forward.5} parent=1 // pred_check
      _
    $region15: #{moco_forward.5} parent=1 // pred_check_branch
      %20 = sbr.rel (0) target = $region17
    $region16: #{moco_forward.5} parent=1 // pred_region
      _
    $region17: #{moco_forward.5} parent=1 // pred_fallthru
      _
    %v21 = vld [vmem:[%s1] sm:$0xff]
    %v22 = vld [vmem:[%s2] sm:$0xff]
    %v23 = vmul.f32 %v21, %v21
    %24 = vadd.xlane.f32.xlu0 %v23
    %v25 = vpop.xlane.xlu0 %24
    %v26 = vrsqrt.pop %v25
    %v27 = vmul.f32 %v26, %v25
    %v28 = vmul.f32 %v27, %v26
    %v29 = vmul.f32 0.5, %v28
    %v30 = vsub.f32 1.5, %v29
    %v31 = vmul.f32 %v26, %v30
    %v32 = vmul.f32 %v25, %v31
    %vm33 = vcmp.eq.f32.partialorder %v25, inf
    %v34 = vsel %vm33, %v25, %v32
    %vm35 = vcmp.eq.f32.partialorder %v25, 0.0
    %v36 = vand.u32 %v25, 2147483648
    %v37 = vsel %vm35, %v36, %v34
    %v38 = vmax.f32 %v37, 1e-12
    %v39 = vrcp.pop %v38
    %v40 = vmul.f32 %v38, %v39
    %v41 = vsub.f32 1.0, %v40
    %v42 = vmul.f32 %v39, %v41
    %v43 = vadd.f32 %v39, %v42
    %vm44 = vweird.f32 %v38
    %vm45 = vweird.f32 %v39
    %vm46 = vmor %vm44, %vm45
    %v47 = vsel %vm46, %v39, %v43
    %v48 = vand.u32 2147483647, %v38
    %vm49 = vcmp.eq.f32.partialorder %v48, 8.507059e+37
    %v50 = vand.u32 %v38, 2147483648
    %v51 = vor.u32 1.1754944e-38, %v50
    %v52 = vsel %vm49, %v51, %v47
    %v53 = vmul.f32 %v21, %v52
    %v54 = vmul.f32 %v22, %v22
    %55 = vadd.xlane.f32.xlu0 %v54
    %v56 = vpop.xlane.xlu0 %55
    %v57 = vrsqrt.pop %v56
    %v58 = vmul.f32 %v57, %v56
    %v59 = vmul.f32 %v58, %v57
    %v60 = vmul.f32 0.5, %v59
    %v61 = vsub.f32 1.5, %v60
    %v62 = vmul.f32 %v57, %v61
    %v63 = vmul.f32 %v56, %v62
    %vm64 = vcmp.eq.f32.partialorder %v56, inf
    %v65 = vsel %vm64, %v56, %v63
    %vm66 = vcmp.eq.f32.partialorder %v56, 0.0
    %v67 = vand.u32 %v56, 2147483648
    %v68 = vsel %vm66, %v67, %v65
    %v69 = vmax.f32 %v68, 1e-12
    %v70 = vrcp.pop %v69
    %v71 = vmul.f32 %v69, %v70
    %v72 = vsub.f32 1.0, %v71
    %v73 = vmul.f32 %v70, %v72
    %v74 = vadd.f32 %v70, %v73
    %vm75 = vweird.f32 %v69
    %vm76 = vweird.f32 %v70
    %vm77 = vmor %vm75, %vm76
    %v78 = vsel %vm77, %v70, %v74
    %v79 = vand.u32 2147483647, %v69
    %vm80 = vcmp.eq.f32.partialorder %v79, 8.507059e+37
    %v81 = vand.u32 %v69, 2147483648
    %v82 = vor.u32 1.1754944e-38, %v81
    %v83 = vsel %vm80, %v82, %v78
    %v84 = vmul.f32 %v22, %v83
    %v85 = vld [vmem:[%s0] sm:$0xff]
    %v86 = vld [vmem:[%s0 + $0x8] sm:$0xff]
    %v87 = vld [vmem:[%s0 + $0x10] sm:$0xff]
    %v88 = vld [vmem:[%s0 + $0x18] sm:$0xff]
    %v89 = vld [vmem:[%s0 + $0x20] sm:$0xff]
    %v90 = vld [vmem:[%s0 + $0x28] sm:$0xff]
    %v91 = vld [vmem:[%s0 + $0x30] sm:$0xff]
    %v92 = vld [vmem:[%s0 + $0x38] sm:$0xff]
    %v93 = vld [vmem:[%s0 + $0x40] sm:$0xff]
    %v94 = vld [vmem:[%s0 + $0x48] sm:$0xff]
    %v95 = vld [vmem:[%s0 + $0x50] sm:$0xff]
    %v96 = vld [vmem:[%s0 + $0x58] sm:$0xff]
    %v97 = vld [vmem:[%s0 + $0x60] sm:$0xff]
    %v98 = vld [vmem:[%s0 + $0x68] sm:$0xff]
    %v99 = vld [vmem:[%s0 + $0x70] sm:$0xff]
    %v100 = vld [vmem:[%s0 + $0x78] sm:$0xff]
    %v101 = vmul.f32 %v53, %v84
    %102 = vadd.xlane.f32.xlu0 %v101
    %v103 = vpop.xlane.xlu0 %102
    %104 = vmatpush.xpose.msra.mxu0 %v100
    %105 = vmatpush.xpose.msra.mxu0 %v99
    %106 = vmatpush.xpose.msra.mxu0 %v98
    %107 = vmatpush.xpose.msra.mxu0 %v97
    %108 = vmatpush.xpose.msra.mxu0 %v96
    %109 = vmatpush.xpose.msra.mxu0 %v95
    %110 = vmatpush.xpose.msra.mxu0 %v94
    %111 = vmatpush.xpose.msra.mxu0 %v93
    %112 = vmatpush.xpose.msra.mxu0 %v92
    %113 = vmatpush.xpose.msra.mxu0 %v91
    %114 = vmatpush.xpose.msra.mxu0 %v90
    %115 = vmatpush.xpose.msra.mxu0 %v89
    %116 = vmatpush.xpose.msra.mxu0 %v88
    %117 = vmatpush.xpose.msra.mxu0 %v87
    %118 = vmatpush.xpose.msra.mxu0 %v86
    %119 = vmatpush.xpose.msra.mxu0 %v85
    %120 = vmatmul.f32.gmra.mxu0 %v53
    %v121 = vpop.f32.mrf.mxu0
    %v122 = vadd.f32 0.0, %v121
    %123 = vdwg.mxu0
    %125 = vrot.lane.b32.xlu0 %v122, 1
    %v126 = vpop.permute.xlu0 %125
    %vm128 = vcmask 7168
    %v129 = vsel %vm128, %v103, %v126
    %v130 = vmul.f32 %v129, 14.285714
    %v131 = vmul.f32 %v126, 14.285714
    %132 = vst [vmem:[#allocation3] sm:$0xff] %v130
    %133 = vst.msk [vmem:[#allocation3 + $0x8] sm:$0xff] %vm128, %v131
    %134 = vst [vmem:[%s5] sm:$0xff] %v85
    %135 = vst [vmem:[%s5 + $0x8] sm:$0xff] %v86
    %136 = vst [vmem:[%s5 + $0x10] sm:$0xff] %v87
    %137 = vst [vmem:[%s5 + $0x18] sm:$0xff] %v88
    %138 = vst [vmem:[%s5 + $0x20] sm:$0xff] %v89
    %139 = vst [vmem:[%s5 + $0x28] sm:$0xff] %v90
    %140 = vst [vmem:[%s5 + $0x30] sm:$0xff] %v91
    %141 = vst [vmem:[%s5 + $0x38] sm:$0xff] %v92
    %142 = vst [vmem:[%s5 + $0x40] sm:$0xff] %v93
    %143 = vst [vmem:[%s5 + $0x48] sm:$0xff] %v94
    %144 = vst [vmem:[%s5 + $0x50] sm:$0xff] %v95
    %145 = vst [vmem:[%s5 + $0x58] sm:$0xff] %v96
    %146 = vst [vmem:[%s5 + $0x60] sm:$0xff] %v97
    %147 = vst [vmem:[%s5 + $0x68] sm:$0xff] %v98
    %148 = vst [vmem:[%s5 + $0x70] sm:$0xff] %v99
    %149 = vst [vmem:[%s5 + $0x78] sm:$0xff] %v100
    %s150 = sld [smem:[#allocation2]]
    %s151 = scalar_lea.vmem %s5, %s150
    %152 = vst [vmem:[%s151] sm:$0xff] %v84
    // Predicated region
    $region18: #{moco_forward.5} parent=1 // pred_check
      _
    $region19: #{moco_forward.5} parent=1 // pred_check_branch
      %154 = sbr.rel (0) target = $region21
    $region20: #{moco_forward.5} parent=1 // pred_region
      %156 = vsyncadd [#allocation4], 0
      %s158 = sshll.u32 [#allocation3], 4
      %s159 = int_to_ptr.vmem [resolvable:$true] %s158
      %s160 = sshll.u32 %s4, 4
      %s161 = int_to_ptr.hbm [resolvable:$true] %s160
      %163 = dma.vmem_to_hbm [thread:$0]  %s159, 256, %s161, [#allocation4]
    $region21: #{moco_forward.5} parent=1 // pred_fallthru
      _
    // Predicated region
    $region22: #{moco_forward.5} parent=1 // pred_check
      _
    $region23: #{moco_forward.5} parent=1 // pred_check_branch
      %165 = sbr.rel (0) target = $region25
    $region24: #{moco_forward.5} parent=1 // pred_region
      _
    $region25: #{moco_forward.5} parent=1 // pred_fallthru
      _
    // Predicated region
    $region26: #{moco_forward.5} parent=1 // pred_check
      _
    $region27: #{moco_forward.5} parent=1 // pred_check_branch
      %167 = sbr.rel (0) target = $region29
    $region28: #{moco_forward.5} parent=1 // pred_region
      %169 = dma.done [#allocation4], 256
    $region29: #{moco_forward.5} parent=1 // pred_fallthru
      _
    // Predicated region
    $region30: #{moco_forward.5} parent=1 // pred_check
      _
    $region31: #{moco_forward.5} parent=1 // pred_check_branch
      %171 = sbr.rel (0) target = $region33
    $region32: #{moco_forward.5} parent=1 // pred_region
      _
    $region33: #{moco_forward.5} parent=1 // pred_fallthru
      _
    %172 = vsyncpa [#allocation4], 1

</llo_original>
